<compile_context>
chip_gen: v6e
topology: v6e:2x2x1
jax: 0.10.0
libtpu: 0.0.40
codegen_flags: <defaults>
</compile_context>

<pallas_src>
import functools
import math

import numpy as np
import jax
import jax.numpy as jnp
from jax.experimental import pallas as pl
from jax.experimental.pallas import tpu as pltpu


def _tpu_device_kind():
    try:
        dev = jax.devices()[0]
        if dev.platform != "tpu":
            return ""
        return dev.device_kind.lower()
    except Exception:
        return ""


def _use_xlu_roll():
    # pltpu.roll lowers to a single XLU lane rotate under Mosaic.  Fall back to
    # slice+concat shifts when not targeting a real TPU (e.g. CPU interpret),
    # where the Mosaic-specific primitive may have no implementation.
    try:
        return jax.default_backend() == "tpu"
    except Exception:
        return False


def _num_parallel_chunks():
    kind = _tpu_device_kind()
    if not kind:
        return 1
    # v5e / v6e have a single TensorCore per chip; v4 / v5p (megacore) and v7x
    # have two, so a 2-way "parallel" outer grid axis keeps both busy.
    if ("v5 lite" in kind or "v5e" in kind or "v6 lite" in kind or "v6e" in kind):
        return 1
    return 2


def _default_block_rows():
    # 4096 rows x 384 lanes x f32 = 6 MiB per block: big enough to amortize the
    # ~0.35 us per-grid-step overhead at v6e/v7x HBM bandwidth, small enough
    # that the double-buffered pipeline stays far below v7x's 64 MiB VMEM.
    return 4096 if _tpu_device_kind() else 1024


def _flatness_kernel(x_ref, o_ref, acc_ref, *, c, lanes, tm, g_in, rows,
                     full_blocks, use_roll):
    """Accumulate sum of per-gaussian min(|scales|) for one (tm, lanes) block.

    x_ref:   (tm, lanes)  interleaved scales (flat index = gaussian * c + chan)
    o_ref:   (8, 128)     lane-dense partial sums for this parallel chunk
    acc_ref: (8, lanes)   f32 running partial sums (VMEM scratch)
    """
    o = pl.program_id(0)            # parallel chunk (megacore axis)
    i = pl.program_id(1)            # sequential step within the chunk
    blk = o * g_in + i              # global block index (may overhang)

    @pl.when(i == 0)
    def _init():
        acc_ref[...] = jnp.zeros_like(acc_ref)

    x = x_ref[...]
    # bf16 inputs keep bf16 for abs/roll/min (packed vregs on v6e/v7x); cast to
    # f32 only at the accumulate.  Other dtypes are upcast to f32 up front.
    xw = x if x.dtype == jnp.bfloat16 else x.astype(jnp.float32)
    xa = jnp.abs(xw)

    # Per-gaussian min over its c consecutive lanes; valid at lanes that are a
    # multiple of c.  lanes % c == 0 keeps every gaussian inside one row, so
    # the rotate wrap-around only touches lanes masked out at finalize time.
    m = xa
    for k in range(1, c):
        if use_roll:
            shifted = pltpu.roll(xa, shift=lanes - k, axis=1)   # == jnp.roll(xa, -k)
        else:
            shifted = jnp.concatenate([xa[:, k:], xa[:, :k]], axis=1)
        m = jnp.minimum(m, shifted)

    def _accumulate(vals):
        # 8-aligned, layout-preserving sublane split: per-step work is plain
        # full-vreg adds; cross-sublane / cross-lane folds are deferred to the
        # once-per-chunk finalize.
        acc_ref[...] += vals.astype(jnp.float32).reshape(tm // 8, 8, lanes).sum(axis=0)

    # Fast path: fully populated blocks need no bounds mask at all.
    @pl.when(blk < full_blocks)
    def _interior():
        _accumulate(m)

    # Boundary path: the partial last block and the clamped overhang steps of
    # the last parallel chunk zero every row at or beyond `rows`.
    @pl.when(blk >= full_blocks)
    def _boundary():
        row = blk * tm + jax.lax.broadcasted_iota(jnp.int32, (tm, lanes), 0)
        _accumulate(jnp.where(row < rows, m, 0.0))

    @pl.when(i == g_in - 1)
    def _finalize():
        # Keep only gaussian-start lanes, then fold 384 -> 128 lanes and store
        # one lane-dense (8, 128) block per parallel chunk.
        lane = jax.lax.broadcasted_iota(jnp.int32, (8, lanes), 1)
        masked = jnp.where(lane % c == 0, acc_ref[...], 0.0)
        folded = masked[:, 0:128]
        for k in range(1, lanes // 128):
            folded = folded + masked[:, k * 128:(k + 1) * 128]
        o_ref[...] = folded


def _per_render_flatness_sum(scales, *, block_rows=None):
    """sum over gaussians of min_c |scales[g, c]|; returns (sum_f32, n_gauss)."""
    c = int(scales.shape[-1])
    n_gauss = int(np.prod(scales.shape[:-1]))
    if n_gauss == 0:
        return jnp.float32(0.0), 0

    lanes = math.lcm(c, 128)                 # 384 for c = 3
    n_elems = n_gauss * c
    flat = jnp.reshape(scales, (-1,))
    rows = n_elems // lanes                  # number of full 384-lane rows

    if rows < 8:
        # Too small for a kernel launch (block sublane dim must be >= 8).
        s = jnp.sum(jnp.min(jnp.abs(flat.reshape(-1, c)), axis=-1),
                    dtype=jnp.float32)
        return s, n_gauss

    n_main = rows * lanes
    # Ragged tail (< lanes elements, whole gaussians since lanes % c == 0):
    # plain jnp — no jnp.pad that would re-stream the whole tensor through HBM.
    tail_sum = None
    if n_main < n_elems:
        tail = flat[n_main:].reshape(-1, c)
        tail_sum = jnp.sum(jnp.min(jnp.abs(tail), axis=-1), dtype=jnp.float32)

    # Layout-preserving view: a pure bitcast when n_elems % lanes == 0; when a
    # tail exists only the divisible prefix is sliced.
    main = flat if n_main == n_elems else flat[:n_main]
    x2 = jnp.reshape(main, (rows, lanes))

    if block_rows is None:
        block_rows = _default_block_rows()
    tm = max(8, (min(int(block_rows), rows) // 8) * 8)
    num_blocks = pl.cdiv(rows, tm)
    full_blocks = rows // tm                 # blocks that need no bounds mask

    g_out = _num_parallel_chunks() if num_blocks >= 2 else 1
    g_in = pl.cdiv(num_blocks, g_out)

    kernel = functools.partial(
        _flatness_kernel, c=c, lanes=lanes, tm=tm, g_in=g_in, rows=rows,
        full_blocks=full_blocks, use_roll=_use_xlu_roll())

    def x_map(o, i):
        # Clamp the (rare) overhang steps of the last parallel chunk onto an
        # in-bounds block; their contribution is zeroed by the in-kernel mask.
        return (jnp.minimum(o * g_in + i, num_blocks - 1), 0)

    # ~6 live (tm, lanes) f32 slabs (double-buffered input + abs/roll/min
    # temporaries); keep below v7x's 64 MiB physical VMEM.
    vmem_limit = int(min(56 << 20, max(32 << 20, 6 * tm * lanes * 4)))

    partials = pl.pallas_call(
        kernel,
        out_shape=jax.ShapeDtypeStruct((g_out * 8, 128), jnp.float32),
        grid_spec=pltpu.PrefetchScalarGridSpec(
            num_scalar_prefetch=0,
            grid=(g_out, g_in),
            in_specs=[pl.BlockSpec((tm, lanes), x_map)],
            out_specs=pl.BlockSpec((8, 128), lambda o, i: (o, 0)),
            scratch_shapes=[pltpu.VMEM((8, lanes), jnp.float32)],
        ),
        compiler_params=pltpu.CompilerParams(
            dimension_semantics=("parallel", "arbitrary"),
            vmem_limit_bytes=vmem_limit,
        ),
    )(x2)

    total = jnp.sum(partials)
    if tail_sum is not None:
        total = total + tail_sum
    return total, n_gauss


def gs_flatness_loss(scales_list, weight=100.0, block_rows=None):
    """JAX/Pallas equivalent of GSFlatnessLoss.forward.

    scales_list: per-render gaussian scale arrays of shape (..., C) (typically
    (N_gaussians, 3)); renders may have different gaussian counts.
    Returns {'gs_flatness_loss': scalar}.
    """
    # TODO(synk): for many tiny renders, a single fused pallas_call with
    # scalar-prefetched per-render offsets would amortize the launch cost.
    losses = []
    for scales in scales_list:
        total, n = _per_render_flatness_sum(scales, block_rows=block_rows)
        losses.append(total / max(n, 1))     # per-render mean(min |scales|)
    final_loss = sum(losses) / len(losses)
    return {"gs_flatness_loss": jnp.float32(weight) * final_loss}


def _reference(scales_list, weight=100.0):
    losses = [jnp.mean(jnp.min(jnp.abs(s), axis=-1)) for s in scales_list]
    return jnp.float32(weight) * (sum(losses) / len(losses))


if __name__ == "__main__":
    key = jax.random.PRNGKey(0)
    # Per-render gaussian scales, shape (N, 3); different N per render so the
    # aligned (bitcast) path and the ragged-tail / partial-block / overhang
    # paths are all exercised.
    counts = [4096, 5000]
    keys = jax.random.split(key, len(counts))
    scales_list = [
        jax.random.normal(k, (n, 3), dtype=jnp.float32)
        for k, n in zip(keys, counts)
    ]

    # Small block_rows: multi-step accumulation, parallel axis, masked tail.
    out_small = gs_flatness_loss(scales_list, weight=100.0, block_rows=8)
    # Default block_rows: large-block fast path.
    out_big = gs_flatness_loss(scales_list, weight=100.0)
    loss_small = jax.block_until_ready(out_small["gs_flatness_loss"])
    loss_big = jax.block_until_ready(out_big["gs_flatness_loss"])

    ref = _reference(scales_list, weight=100.0)
    assert jnp.allclose(loss_small, ref, rtol=1e-5, atol=1e-6), (loss_small, ref)
    assert jnp.allclose(loss_big, ref, rtol=1e-5, atol=1e-6), (loss_big, ref)

    print("KERNEL_OK")
</pallas_src>

<mosaic_0001>
module attributes {stable_mosaic.version = 11 : i64} {
  func.func @_flatness_kernel(%arg0: i32, %arg1: i32, %arg2: memref<8x384xf32, #tpu.memory_space<vmem>>, %arg3: memref<8x128xf32, #tpu.memory_space<vmem>>, %arg4: memref<8x384xf32, #tpu.memory_space<vmem>>) attributes {dimension_semantics = [#tpu.dimension_semantics<parallel>, #tpu.dimension_semantics<arbitrary>], iteration_bounds = array<i64: 1, 4>, scalar_prefetch = 0 : i64, scratch_operands = 1 : i64, tpu.core_type = #tpu.core_type<tc>, window_params = [{transform_indices = @transform_0, window_bounds = array<i64: 8, 384>}, {transform_indices = @transform_1, window_bounds = array<i64: 8, 128>}]} {
    %c4_i32 = arith.constant 4 : i32
    %0 = arith.muli %arg0, %c4_i32 : i32
    %1 = arith.addi %0, %arg1 : i32
    %c0_i32 = arith.constant 0 : i32
    %2 = arith.cmpi eq, %arg1, %c0_i32 : i32
    %3 = arith.extui %2 : i1 to i32
    %c0_i32_0 = arith.constant 0 : i32
    %4 = arith.cmpi ne, %3, %c0_i32_0 : i32
    scf.if %4 {
      %cst = arith.constant 0.000000e+00 : f32
      %24 = vector.broadcast %cst : f32 to vector<8x384xf32>
      %c0_7 = arith.constant 0 : index
      %c0_8 = arith.constant 0 : index
      %25 = vector.load %arg4[%c0_7, %c0_8] : memref<8x384xf32, #tpu.memory_space<vmem>>, vector<8x384xf32>
      tpu.vector_store %arg4[%c0_7, %c0_8], %24 {strides = array<i32>} : memref<8x384xf32, #tpu.memory_space<vmem>>, vector<8x384xf32>,
    } else {
    }
    %c0 = arith.constant 0 : index
    %c0_1 = arith.constant 0 : index
    %5 = vector.load %arg2[%c0, %c0_1] : memref<8x384xf32, #tpu.memory_space<vmem>>, vector<8x384xf32>
    %6 = math.absf %5 : vector<8x384xf32>
    %7 = vector.extract_strided_slice %6 {offsets = [0, 1], sizes = [8, 383], strides = [1, 1]} : vector<8x384xf32> to vector<8x383xf32>
    %8 = vector.extract_strided_slice %6 {offsets = [0, 0], sizes = [8, 1], strides = [1, 1]} : vector<8x384xf32> to vector<8x1xf32>
    %9 = tpu.concatenate %7, %8 in 1 : vector<8x383xf32>, vector<8x1xf32> -> vector<8x384xf32>
    %10 = arith.minimumf %6, %9 : vector<8x384xf32>
    %11 = vector.extract_strided_slice %6 {offsets = [0, 2], sizes = [8, 382], strides = [1, 1]} : vector<8x384xf32> to vector<8x382xf32>
    %12 = vector.extract_strided_slice %6 {offsets = [0, 0], sizes = [8, 2], strides = [1, 1]} : vector<8x384xf32> to vector<8x2xf32>
    %13 = tpu.concatenate %11, %12 in 1 : vector<8x382xf32>, vector<8x2xf32> -> vector<8x384xf32>
    %14 = arith.minimumf %10, %13 : vector<8x384xf32>
    %c4_i32_2 = arith.constant 4 : i32
    %15 = arith.cmpi slt, %1, %c4_i32_2 : i32
    %16 = arith.extui %15 : i1 to i32
    %c0_i32_3 = arith.constant 0 : i32
    %17 = arith.cmpi ne, %16, %c0_i32_3 : i32
    scf.if %17 {
      %c0_7 = arith.constant 0 : index
      %c0_8 = arith.constant 0 : index
      %24 = vector.load %arg4[%c0_7, %c0_8] : memref<8x384xf32, #tpu.memory_space<vmem>>, vector<8x384xf32>
      %25 = vector.shape_cast %14 : vector<8x384xf32> to vector<1x8x384xf32>
      %cst = arith.constant dense<0.000000e+00> : vector<8x384xf32>
      %26 = vector.multi_reduction <add>, %25, %cst [0] : vector<1x8x384xf32> to vector<8x384xf32>
      %27 = arith.addf %24, %26 : vector<8x384xf32>
      %c0_9 = arith.constant 0 : index
      %c0_10 = arith.constant 0 : index
      %28 = vector.load %arg4[%c0_9, %c0_10] : memref<8x384xf32, #tpu.memory_space<vmem>>, vector<8x384xf32>
      tpu.vector_store %arg4[%c0_9, %c0_10], %27 {strides = array<i32>} : memref<8x384xf32, #tpu.memory_space<vmem>>, vector<8x384xf32>,
    } else {
    }
    %c4_i32_4 = arith.constant 4 : i32
    %18 = arith.cmpi sge, %1, %c4_i32_4 : i32
    %19 = arith.extui %18 : i1 to i32
    %c0_i32_5 = arith.constant 0 : i32
    %20 = arith.cmpi ne, %19, %c0_i32_5 : i32
    scf.if %20 {
      %c8_i32 = arith.constant 8 : i32
      %24 = arith.muli %1, %c8_i32 : i32
      %25 = tpu.iota {dimensions = array<i32: 0>} : vector<8x384xi32>
      %26 = vector.broadcast %24 : i32 to vector<8x384xi32>
      %27 = arith.addi %26, %25 : vector<8x384xi32>
      %c32_i32 = arith.constant 32 : i32
      %28 = vector.broadcast %c32_i32 : i32 to vector<8x384xi32>
      %29 = arith.cmpi slt, %27, %28 : vector<8x384xi32>
      %cst = arith.constant 0.000000e+00 : f32
      %30 = vector.broadcast %cst : f32 to vector<8x384xf32>
      %31 = arith.select %29, %14, %30 : vector<8x384xi1>, vector<8x384xf32>
      %c0_7 = arith.constant 0 : index
      %c0_8 = arith.constant 0 : index
      %32 = vector.load %arg4[%c0_7, %c0_8] : memref<8x384xf32, #tpu.memory_space<vmem>>, vector<8x384xf32>
      %33 = vector.shape_cast %31 : vector<8x384xf32> to vector<1x8x384xf32>
      %cst_9 = arith.constant dense<0.000000e+00> : vector<8x384xf32>
      %34 = vector.multi_reduction <add>, %33, %cst_9 [0] : vector<1x8x384xf32> to vector<8x384xf32>
      %35 = arith.addf %32, %34 : vector<8x384xf32>
      %c0_10 = arith.constant 0 : index
      %c0_11 = arith.constant 0 : index
      %36 = vector.load %arg4[%c0_10, %c0_11] : memref<8x384xf32, #tpu.memory_space<vmem>>, vector<8x384xf32>
      tpu.vector_store %arg4[%c0_10, %c0_11], %35 {strides = array<i32>} : memref<8x384xf32, #tpu.memory_space<vmem>>, vector<8x384xf32>,
    } else {
    }
    %c3_i32 = arith.constant 3 : i32
    %21 = arith.cmpi eq, %arg1, %c3_i32 : i32
    %22 = arith.extui %21 : i1 to i32
    %c0_i32_6 = arith.constant 0 : i32
    %23 = arith.cmpi ne, %22, %c0_i32_6 : i32
    scf.if %23 {
      %24 = tpu.iota {dimensions = array<i32: 1>} : vector<8x384xi32>
      %c3_i32_7 = arith.constant 3 : i32
      %c0_i32_8 = arith.constant 0 : i32
      %25 = arith.cmpi eq, %c3_i32_7, %c0_i32_8 : i32
      %c1_i32 = arith.constant 1 : i32
      %26 = arith.select %25, %c1_i32, %c3_i32_7 : i32
      %27 = vector.broadcast %26 : i32 to vector<8x384xi32>
      %28 = arith.remsi %24, %27 : vector<8x384xi32>
      %c0_i32_9 = arith.constant 0 : i32
      %29 = vector.broadcast %c0_i32_9 : i32 to vector<8x384xi32>
      %30 = arith.cmpi ne, %28, %29 : vector<8x384xi32>
      %c0_i32_10 = arith.constant 0 : i32
      %31 = vector.broadcast %c0_i32_10 : i32 to vector<8x384xi32>
      %32 = arith.cmpi slt, %28, %31 : vector<8x384xi32>
      %c0_i32_11 = arith.constant 0 : i32
      %33 = arith.cmpi slt, %26, %c0_i32_11 : i32
      %34 = vector.broadcast %33 : i1 to vector<8x384xi1>
      %35 = vector.broadcast %34 : vector<8x384xi1> to vector<8x384xi1>
      %36 = arith.xori %32, %35 : vector<8x384xi1>
      %37 = arith.andi %36, %30 : vector<8x384xi1>
      %38 = vector.broadcast %26 : i32 to vector<8x384xi32>
      %39 = arith.addi %28, %38 : vector<8x384xi32>
      %40 = arith.select %37, %39, %28 : vector<8x384xi1>, vector<8x384xi32>
      %c0_i32_12 = arith.constant 0 : i32
      %41 = vector.broadcast %c0_i32_12 : i32 to vector<8x384xi32>
      %42 = arith.cmpi eq, %40, %41 : vector<8x384xi32>
      %c0_13 = arith.constant 0 : index
      %c0_14 = arith.constant 0 : index
      %43 = vector.load %arg4[%c0_13, %c0_14] : memref<8x384xf32, #tpu.memory_space<vmem>>, vector<8x384xf32>
      %cst = arith.constant 0.000000e+00 : f32
      %44 = vector.broadcast %cst : f32 to vector<8x384xf32>
      %45 = arith.select %42, %43, %44 : vector<8x384xi1>, vector<8x384xf32>
      %46 = vector.extract_strided_slice %45 {offsets = [0, 0], sizes = [8, 128], strides = [1, 1]} : vector<8x384xf32> to vector<8x128xf32>
      %47 = vector.extract_strided_slice %45 {offsets = [0, 128], sizes = [8, 128], strides = [1, 1]} : vector<8x384xf32> to vector<8x128xf32>
      %48 = arith.addf %46, %47 : vector<8x128xf32>
      %49 = vector.extract_strided_slice %45 {offsets = [0, 256], sizes = [8, 128], strides = [1, 1]} : vector<8x384xf32> to vector<8x128xf32>
      %50 = arith.addf %48, %49 : vector<8x128xf32>
      %c0_15 = arith.constant 0 : index
      %c0_16 = arith.constant 0 : index
      %51 = vector.load %arg3[%c0_15, %c0_16] : memref<8x128xf32, #tpu.memory_space<vmem>>, vector<8x128xf32>
      tpu.vector_store %arg3[%c0_15, %c0_16], %50 {strides = array<i32>} : memref<8x128xf32, #tpu.memory_space<vmem>>, vector<8x128xf32>,
    } else {
    }
    return
  }
  func.func @transform_0(%arg0: i32, %arg1: i32) -> (i32, i32) {
    %c4_i32 = arith.constant 4 : i32
    %0 = arith.muli %arg0, %c4_i32 : i32
    %1 = arith.addi %0, %arg1 : i32
    %c3_i32 = arith.constant 3 : i32
    %2 = arith.minsi %1, %c3_i32 : i32
    %c0_i32 = arith.constant 0 : i32
    %c0_i32_0 = arith.constant 0 : i32
    return %2, %c0_i32 : i32, i32
  }
  func.func @transform_1(%arg0: i32, %arg1: i32) -> (i32, i32) {
    %c0_i32 = arith.constant 0 : i32
    %c0_i32_0 = arith.constant 0 : i32
    return %arg0, %c0_i32 : i32, i32
  }
}

</mosaic_0001>

<llo_original>
// kernel: tpu_custom_call.1
$region0: #{tpu_custom_call.1}
  #allocation0 [shape = 'u32[]', space=smem, size = 0x4, offset = 0x4, fixed_abs, tag = 'smem constant byte address 0x4 - core index']
  #allocation1 [shape = 'u32[144,128]{1,0:T(1,128)}', space=vmem, size = 0x12000, scoped, tag = 'internal scratch']
  #allocation2 [shape = 'f32[8,384]{1,0:T(8,128)}', space=vmem, size = 0x3000, scoped, tag = 'scratch operand']
  %s0 = inlined_call_operand.hbm [shape: f32[32,384], index: 0, kind: input, shape index: {}]
  %s1 = inlined_call_operand.hbm [shape: f32[8,128], index: 1, kind: output, shape index: {}]
  %s2 = sld [smem:[#allocation0]]
  $region57: #{tpu_custom_call.1} parent=0
    _
  %s4 = ssub.s32 1, %s2
  %s5 = scalar_select 0, %s4, %s2
  $region1: #{tpu_custom_call.1} parent=0
    #allocation3 [shape = 'u8[24576]{0}', space=vmem, size = 0x6000, scoped, tag = 'input window, operand 0']
    #allocation4 [shape = 's32[2]{0}', space=sflag, size = 0x8, scoped, tag = 'scoped memory for tpu_custom_call.1']
    #allocation5 [shape = 's32[2]{0}', space=sflag, size = 0x8, scoped, tag = 'scoped memory for tpu_custom_call.1']
    #allocation6 [shape = 'u8[4096]{0}', space=vmem, size = 0x1000, scoped, tag = 'output window, operand 0, single buffered']
    %6 = vsyncpa [#allocation4], 0
    %s7 = scalar_lea.sflag [#allocation4], 1
    %8 = vsyncpa %s7, 0
    %9 = vsyncpa [#allocation5], 0
    loop: start=0, step=1, limit=6
    $region2: #{tpu_custom_call.1} parent=1 // loop_pre_header
      _
    $region3: #{tpu_custom_call.1} parent=1 // loop_header
      %s11 = sphi 0, %s15
      %p12 = scmp.ge.s32.totalorder %s11, 6
      %s18 = sphi 0, %s30
      %s19 = sphi 0, %s26
      %s20 = sphi 0, %s18
      %s21 = sphi 0, %s19
      %s22 = sphi 0, %s20
      %s23 = sphi 0, %s21
      %s41 = sphi 0, %s43
      %s44 = sphi 0, %s41
      %s45 = sphi 0, %s44
      %s61 = sphi 0, %s45
      %s67 = sphi 0, %s69
      %s70 = sphi 0, %s67
      %s71 = sphi 0, %s70
      %s87 = sphi 0, %s71
    $region4: #{tpu_custom_call.1} parent=1 // loop_header_branch
      %14 = sbr.rel (%p12) target = $region8
    $region5: #{tpu_custom_call.1} parent=1 // loop_body
      %s16 = ssub.s32 %s11, 1
      %s17 = ssub.s32 %s11, 2
      %s24 = sadd.s32 1, %s19
      %p25 = scmp.ge.s32.totalorder %s24, 4
      %s26 = scalar_select %p25, 0, %s24
      %s27 = sadd.s32 1, %s18
      %s28 = scalar_select %p25, %s27, %s18
      %p29 = scmp.ge.s32.totalorder %s28, 1
      %s30 = scalar_select %p29, 0, %s28
      %s31 = smul.u32 %s18, 4
      %s32 = sadd.s32 %s31, %s19
      %p33 = scmp.lt.s32.totalorder %s32, 3
      %s34 = scalar_select %p33, %s32, 3
      %s35 = smul.u32 %s30, 4
      %s36 = sadd.s32 %s35, %s26
      %p37 = scmp.lt.s32.totalorder %s36, 3
      %s38 = scalar_select %p37, %s36, 3
      %s39 = ssub.s32 %s34, %s38
      %p40 = scmp.eq.s32.totalorder %s39, 0
      %s42 = sadd.s32 %s41, 1
      %s43 = scalar_select %p40, %s41, %s42
      %p46 = pneg %p40
      %p47 = scmp.eq.s32.totalorder %s11, 3
      %p48 = por %p46, %p47
      %p49 = scmp.ne.s32.totalorder %s41, %s44
      %p50 = scmp.eq.s32.totalorder %s11, 0
      %p51 = por %p49, %p50
      %p52 = scmp.ne.s32.totalorder %s41, %s44
      %p53 = scmp.eq.s32.totalorder %s16, 3
      %p54 = por %p52, %p53
      %p55 = scmp.ne.s32.totalorder %s44, %s45
      %p56 = scmp.eq.s32.totalorder %s16, 0
      %p57 = por %p55, %p56
      %p58 = scmp.ne.s32.totalorder %s44, %s45
      %p59 = scmp.eq.s32.totalorder %s17, 3
      %p60 = por %p58, %p59
      %p62 = scmp.ne.s32.totalorder %s45, %s61
      %p63 = scmp.eq.s32.totalorder %s17, 0
      %p64 = por %p62, %p63
      %s65 = ssub.s32 %s18, %s30
      %p66 = scmp.eq.s32.totalorder %s65, 0
      %s68 = sadd.s32 %s67, 1
      %s69 = scalar_select %p66, %s67, %s68
      %p72 = pneg %p66
      %p73 = scmp.eq.s32.totalorder %s11, 3
      %p74 = por %p72, %p73
      %p75 = scmp.ne.s32.totalorder %s67, %s70
      %p76 = scmp.eq.s32.totalorder %s11, 0
      %p77 = por %p75, %p76
      %p78 = scmp.ne.s32.totalorder %s67, %s70
      %p79 = scmp.eq.s32.totalorder %s16, 3
      %p80 = por %p78, %p79
      %p81 = scmp.ne.s32.totalorder %s70, %s71
      %p82 = scmp.eq.s32.totalorder %s16, 0
      %p83 = por %p81, %p82
      %p84 = scmp.ne.s32.totalorder %s70, %s71
      %p85 = scmp.eq.s32.totalorder %s17, 3
      %p86 = por %p84, %p85
      %p88 = scmp.ne.s32.totalorder %s71, %s87
      %p89 = scmp.eq.s32.totalorder %s17, 0
      %p90 = por %p88, %p89
      %p91 = scmp.le.s32.totalorder 1, %s11
      %p92 = scmp.lt.s32.totalorder %s11, 5
      %p93 = pnand %p91, %p92
      %p94 = pneg %p93
      // Predicated region
      $region9: #{tpu_custom_call.1} parent=5 // pred_check
        _
      $region10: #{tpu_custom_call.1} parent=5 // pred_check_branch
        %96 = sbr.rel (%p93) target = $region12
      $region11: #{tpu_custom_call.1} parent=5 // pred_region
        %s97 = ssub.s32 %s11, 1
      $region12: #{tpu_custom_call.1} parent=5 // pred_fallthru
        _
      %p98 = scmp.lt.s32.totalorder %s11, 4
      // Predicated region
      $region13: #{tpu_custom_call.1} parent=5 // pred_check
        %p99 = pneg %p98
      $region14: #{tpu_custom_call.1} parent=5 // pred_check_branch
        %101 = sbr.rel (%p99) target = $region16
      $region15: #{tpu_custom_call.1} parent=5 // pred_region
        // Predicated region
        $region17: #{tpu_custom_call.1} parent=15 // pred_check
          %p102 = pneg %p51
        $region18: #{tpu_custom_call.1} parent=15 // pred_check_branch
          %104 = sbr.rel (%p102) target = $region20
        $region19: #{tpu_custom_call.1} parent=15 // pred_region
          %s105 = sand.u32 %s41, 1
          %s106 = scalar_lea.sflag [#allocation4], %s105
          %s107 = sand.u32 %s41, 1
          %s108 = smul.addr %s107, 24
          %s109 = scalar_lea.vmem [#allocation3], %s108
          %s110 = smul.u32 %s18, 4
          %s111 = sadd.s32 %s110, %s19
          %p112 = scmp.lt.s32.totalorder %s111, 3
          %s113 = scalar_select %p112, %s111, 3
          %s115 = ssub.s32 384, 384
          %116 = vsyncadd %s106, %s115
          %s117 = smul.addr %s113, 3
          %s118 = smul.addr %s117, 128
          %s119 = scalar_lea.hbm %s0, %s118
          %s121 = sshll.u32 %s109, 4
          %s122 = int_to_ptr.vmem [resolvable:$true] %s121
          %124 = dma.hbm_to_vmem [thread:$0]  %s119, 384, %s122, %s106
        $region20: #{tpu_custom_call.1} parent=15 // pred_fallthru
          _
      $region16: #{tpu_custom_call.1} parent=5 // pred_fallthru
        _
      %p125 = scmp.le.s32.totalorder 1, %s11
      %p126 = scmp.lt.s32.totalorder %s11, 5
      %p127 = pnand %p125, %p126
      %p128 = pneg %p127
      // Predicated region
      $region21: #{tpu_custom_call.1} parent=5 // pred_check
        _
      $region22: #{tpu_custom_call.1} parent=5 // pred_check_branch
        %130 = sbr.rel (%p127) target = $region24
      $region23: #{tpu_custom_call.1} parent=5 // pred_region
        %s131 = ssub.s32 %s11, 1
        %s132 = sand.u32 %s44, 1
        %s133 = scalar_lea.sflag [#allocation4], %s132
        %s134 = sand.u32 %s44, 1
        %s135 = smul.addr %s134, 24
        %s136 = scalar_lea.vmem [#allocation3], %s135
        // Predicated region
        $region25: #{tpu_custom_call.1} parent=23 // pred_check
          %p137 = pneg %p57
        $region26: #{tpu_custom_call.1} parent=23 // pred_check_branch
          %139 = sbr.rel (%p137) target = $region28
        $region27: #{tpu_custom_call.1} parent=23 // pred_region
          %140 = dma.done %s133, 384
        $region28: #{tpu_custom_call.1} parent=23 // pred_fallthru
          _
        %s141 = sand.u32 %s44, 1
        %s142 = scalar_lea.sflag [#allocation4], %s141
        %s143 = sand.u32 %s44, 1
        %s144 = smul.addr %s143, 24
        %s145 = scalar_lea.vmem [#allocation3], %s144
        %p146 = pneg %p57
        %p147 = pneg %p54
        %p148 = pneg %p83
        %p149 = pneg %p80
        %s150 = smul.u32 %s20, 4
        %s151 = sadd.s32 %s150, %s21
        %p152 = scmp.lt.s32.totalorder %s151, 3
        %s153 = scalar_select %p152, %s151, 3
        %s154 = smul.u32 %s20, 4
        %s155 = sadd.s32 %s154, %s21
        %p156 = scmp.eq.s32.totalorder %s21, 0
        // Predicated region
        $region29: #{tpu_custom_call.1} parent=23 // pred_check
          %p157 = pneg %p156
        $region30: #{tpu_custom_call.1} parent=23 // pred_check_branch
          %159 = sbr.rel (%p157) target = $region32
        $region31: #{tpu_custom_call.1} parent=23 // pred_region
          %160 = vst [vmem:[#allocation2] sm:$0xff] 0.0
          %161 = vst [vmem:[#allocation2 + $0x8] sm:$0xff] 0.0
          %162 = vst [vmem:[#allocation2 + $0x10] sm:$0xff] 0.0
        $region32: #{tpu_custom_call.1} parent=23 // pred_fallthru
          _
        %v163 = vld [vmem:[%s136] sm:$0xff]
        %v164 = vld [vmem:[%s136 + $0x8] sm:$0xff]
        %v165 = vld [vmem:[%s136 + $0x10] sm:$0xff]
        %v166 = vand.u32 2147483647, %v163
        %v167 = vand.u32 2147483647, %v164
        %v168 = vand.u32 2147483647, %v165
        %172 = vrot.lane.b32.xlu0 %v166, 127
        %v173 = vpop.permute.xlu0 %172
        %174 = vrot.lane.b32.xlu0 %v167, 127
        %v175 = vpop.permute.xlu0 %174
        %176 = vrot.lane.b32.xlu0 %v168, 127
        %v177 = vpop.permute.xlu0 %176
        %vm178 = vcmask 1039360
        %v179 = vsel %vm178, %v173, %v175
        %v180 = vsel %vm178, %v175, %v177
        %v185 = vsel %vm178, %v177, %v173
        %v186 = vmin.f32 %v166, %v179
        %v187 = vmin.f32 %v167, %v180
        %v188 = vmin.f32 %v168, %v185
        %189 = vrot.lane.b32.xlu0 %v166, 126
        %v190 = vpop.permute.xlu0 %189
        %191 = vrot.lane.b32.xlu0 %v167, 126
        %v192 = vpop.permute.xlu0 %191
        %193 = vrot.lane.b32.xlu0 %v168, 126
        %v194 = vpop.permute.xlu0 %193
        %vm195 = vcmask 1031168
        %v196 = vsel %vm195, %v190, %v192
        %v197 = vsel %vm195, %v192, %v194
        %v202 = vsel %vm195, %v194, %v190
        %v203 = vmin.f32 %v186, %v196
        %v204 = vmin.f32 %v187, %v197
        %v205 = vmin.f32 %v188, %v202
        %p206 = scmp.lt.s32.totalorder %s155, 4
        // Predicated region
        $region33: #{tpu_custom_call.1} parent=23 // pred_check
          %p207 = pneg %p206
        $region34: #{tpu_custom_call.1} parent=23 // pred_check_branch
          %209 = sbr.rel (%p207) target = $region36
        $region35: #{tpu_custom_call.1} parent=23 // pred_region
          %v210 = vld [vmem:[#allocation2] sm:$0xff]
          %v211 = vld [vmem:[#allocation2 + $0x8] sm:$0xff]
          %v212 = vld [vmem:[#allocation2 + $0x10] sm:$0xff]
          %v213 = vadd.f32 %v203, 0.0
          %v214 = vadd.f32 %v204, 0.0
          %v215 = vadd.f32 %v205, 0.0
          %v216 = vadd.f32 %v210, %v213
          %v217 = vadd.f32 %v211, %v214
          %v218 = vadd.f32 %v212, %v215
          %219 = vst [vmem:[#allocation2] sm:$0xff] %v216
          %220 = vst [vmem:[#allocation2 + $0x8] sm:$0xff] %v217
          %221 = vst [vmem:[#allocation2 + $0x10] sm:$0xff] %v218
        $region36: #{tpu_custom_call.1} parent=23 // pred_fallthru
          _
        %p222 = scmp.ge.s32.totalorder %s155, 4
        // Predicated region
        $region37: #{tpu_custom_call.1} parent=23 // pred_check
          %p223 = pneg %p222
        $region38: #{tpu_custom_call.1} parent=23 // pred_check_branch
          %225 = sbr.rel (%p223) target = $region40
        $region39: #{tpu_custom_call.1} parent=23 // pred_region
          %s226 = smul.u32 %s155, 8
          %v227 = vlaneseq
          %v228 = vshrl.u32 %v227, 7
          %v229 = vstv %s226
          %v230 = vadd.s32 %v229, %v228
          %vm231 = vcmp.lt.s32.totalorder %v230, 32
          %v232 = vsel %vm231, %v203, 0.0
          %v233 = vsel %vm231, %v204, 0.0
          %v234 = vsel %vm231, %v205, 0.0
          %v235 = vld [vmem:[#allocation2] sm:$0xff]
          %v236 = vld [vmem:[#allocation2 + $0x8] sm:$0xff]
          %v237 = vld [vmem:[#allocation2 + $0x10] sm:$0xff]
          %v238 = vadd.f32 %v232, 0.0
          %v239 = vadd.f32 %v233, 0.0
          %v240 = vadd.f32 %v234, 0.0
          %v241 = vadd.f32 %v235, %v238
          %v242 = vadd.f32 %v236, %v239
          %v243 = vadd.f32 %v237, %v240
          %244 = vst [vmem:[#allocation2] sm:$0xff] %v241
          %245 = vst [vmem:[#allocation2 + $0x8] sm:$0xff] %v242
          %246 = vst [vmem:[#allocation2 + $0x10] sm:$0xff] %v243
        $region40: #{tpu_custom_call.1} parent=23 // pred_fallthru
          _
        %p247 = scmp.eq.s32.totalorder %s21, 3
        // Predicated region
        $region41: #{tpu_custom_call.1} parent=23 // pred_check
          %p248 = pneg %p247
        $region42: #{tpu_custom_call.1} parent=23 // pred_check_branch
          %250 = sbr.rel (%p248) target = $region44
        $region43: #{tpu_custom_call.1} parent=23 // pred_region
          %v251 = vlaneseq
          %v252 = vand.u32 %v251, 127
          %v253 = vadd.s32 %v252, 128
          %v254 = vadd.s32 %v252, 256
          %vm255 = vcmp.lt.s32.totalorder %v252, 0
          %v256 = vsub.s32 0, %v252
          %v257 = vsel %vm255, %v256, %v252
          %v258 = vmul.u32.u64.compose %v257, 2863311531
          %v259 = vextract.low.u32 %v258
          %v260 = vextract.high.u32 %v258
          %v261 = vshrl.u32 %v260, 1
          %v262 = vmul.u32 %v261, 3
          %v263 = vsub.s32 %v257, %v262
          %v264 = vsub.s32 0, %v263
          %v265 = vsel %vm255, %v264, %v263
          %vm266 = vcmp.lt.s32.totalorder %v253, 0
          %v267 = vsub.s32 0, %v253
          %v268 = vsel %vm266, %v267, %v253
          %v269 = vmul.u32.u64.compose %v268, 2863311531
          %v270 = vextract.low.u32 %v269
          %v271 = vextract.high.u32 %v269
          %v272 = vshrl.u32 %v271, 1
          %v273 = vmul.u32 %v272, 3
          %v274 = vsub.s32 %v268, %v273
          %v275 = vsub.s32 0, %v274
          %v276 = vsel %vm266, %v275, %v274
          %vm277 = vcmp.lt.s32.totalorder %v254, 0
          %v278 = vsub.s32 0, %v254
          %v279 = vsel %vm277, %v278, %v254
          %v280 = vmul.u32.u64.compose %v279, 2863311531
          %v281 = vextract.low.u32 %v280
          %v282 = vextract.high.u32 %v280
          %v283 = vshrl.u32 %v282, 1
          %v284 = vmul.u32 %v283, 3
          %v285 = vsub.s32 %v279, %v284
          %v286 = vsub.s32 0, %v285
          %v287 = vsel %vm277, %v286, %v285
          %vm288 = vcmp.ne.s32.totalorder %v265, 0
          %vm289 = vcmp.ne.s32.totalorder %v276, 0
          %vm290 = vcmp.ne.s32.totalorder %v287, 0
          %vm291 = vcmp.lt.s32.totalorder %v265, 0
          %vm292 = vcmp.lt.s32.totalorder %v276, 0
          %vm293 = vcmp.lt.s32.totalorder %v287, 0
          %vm294 = vmand %vm291, %vm288
          %vm295 = vmand %vm292, %vm289
          %vm296 = vmand %vm293, %vm290
          %v297 = vadd.s32 %v265, 3
          %v298 = vadd.s32 %v276, 3
          %v299 = vadd.s32 %v287, 3
          %v300 = vsel %vm294, %v297, %v265
          %v301 = vsel %vm295, %v298, %v276
          %v302 = vsel %vm296, %v299, %v287
          %vm303 = vcmp.eq.s32.totalorder %v300, 0
          %vm304 = vcmp.eq.s32.totalorder %v301, 0
          %vm305 = vcmp.eq.s32.totalorder %v302, 0
          %v306 = vld [vmem:[#allocation2] sm:$0xff]
          %v307 = vld [vmem:[#allocation2 + $0x8] sm:$0xff]
          %v308 = vld [vmem:[#allocation2 + $0x10] sm:$0xff]
          %v309 = vsel %vm303, %v306, 0.0
          %v310 = vsel %vm304, %v307, 0.0
          %v311 = vsel %vm305, %v308, 0.0
          %v312 = vadd.f32 %v309, %v310
          %v313 = vadd.f32 %v312, %v311
          %314 = vst [vmem:[#allocation6] sm:$0xff] %v313
        $region44: #{tpu_custom_call.1} parent=23 // pred_fallthru
          _
        // Predicated region
        $region45: #{tpu_custom_call.1} parent=23 // pred_check
          %p315 = pneg %p80
        $region46: #{tpu_custom_call.1} parent=23 // pred_check_branch
          %317 = sbr.rel (%p315) target = $region48
        $region47: #{tpu_custom_call.1} parent=23 // pred_region
          %s319 = ssub.s32 128, 128
          %320 = vsyncadd [#allocation5], %s319
          %s321 = smul.addr %s20, 128
          %s322 = scalar_lea.hbm %s1, %s321
          %s324 = sshll.u32 [#allocation6], 4
          %s325 = int_to_ptr.vmem [resolvable:$true] %s324
          %327 = dma.vmem_to_hbm [thread:$0]  %s325, 128, %s322, [#allocation5]
        $region48: #{tpu_custom_call.1} parent=23 // pred_fallthru
          _
        // Predicated region
        $region49: #{tpu_custom_call.1} parent=23 // pred_check
          %p328 = pneg %p80
        $region50: #{tpu_custom_call.1} parent=23 // pred_check_branch
          %330 = sbr.rel (%p328) target = $region52
        $region51: #{tpu_custom_call.1} parent=23 // pred_region
          %331 = dma.done [#allocation5], 128
        $region52: #{tpu_custom_call.1} parent=23 // pred_fallthru
          _
      $region24: #{tpu_custom_call.1} parent=5 // pred_fallthru
        _
      %p332 = scmp.le.s32.totalorder 2, %s11
      // Predicated region
      $region53: #{tpu_custom_call.1} parent=5 // pred_check
        %p333 = pneg %p332
      $region54: #{tpu_custom_call.1} parent=5 // pred_check_branch
        %335 = sbr.rel (%p333) target = $region56
      $region55: #{tpu_custom_call.1} parent=5 // pred_region
        %s336 = ssub.s32 %s11, 2
      $region56: #{tpu_custom_call.1} parent=5 // pred_fallthru
        _
    $region6: #{tpu_custom_call.1} parent=1 // loop_footer
      %s15 = sadd.s32 1, %s11
    $region7: #{tpu_custom_call.1} parent=1 // loop_footer_branch
      %10 = sbr.rel target = $region3
    $region8: #{tpu_custom_call.1} parent=1 // loop_exit
      _
    %337 = vsyncpa [#allocation4], 1
    %s338 = scalar_lea.sflag [#allocation4], 1
    %339 = vsyncpa %s338, 1
    %340 = vsyncpa [#allocation5], 1
    %s341 = scalar_lea.sflag [#allocation5], 1
    %342 = vsyncpa %s341, 1

</llo_original>
